<compile_context>
chip_gen: v6e
topology: v6e:2x2x1
jax: 0.10.0
libtpu: 0.0.40
codegen_flags: <defaults>
</compile_context>

<pallas_src>
import math

import jax
import jax.numpy as jnp
from jax.experimental import pallas as pl
from jax.experimental.pallas import tpu as pltpu

BLOCK_SHAPE = (8, 8)                      # codec.block_shape
NCOEFF = BLOCK_SHAPE[0] * BLOCK_SHAPE[1]  # 64 coefficients per block
BPR = 2                                   # compress: blocks packed per kernel row (128 lanes)
WG = 16                                   # decompress: block-cols per grid step (128 lanes/row)
INDEX_RADIUS = 127.0                      # INDICES_RADIUS[torch.int8]
MAX_TM = 4096                             # compress rows per grid step
MAX_S = 512                               # decompress block-rows per grid step
TINY = 1e-30                              # zero-block guard
VMEM_LIMIT = 48 * 1024 * 1024             # fits v7x (64 MiB) with margin, > v5e 16 MiB default


def _ru(a, b):
    return -(-a // b) * b


def cosine_matrix(n, dtype=jnp.float32):
    """Orthonormal DCT-II basis M[element, frequency] (pyblaz `cosine`, forward)."""
    m = [[(1.0 / n) ** 0.5 if f == 0
          else (2.0 / n) ** 0.5 * math.cos((2 * e + 1) * f * math.pi / (2 * n))
          for f in range(n)] for e in range(n)]
    return jnp.array(m, dtype=dtype)


def _t64():
    m = cosine_matrix(BLOCK_SHAPE[0])
    # t64[e*8+g, f*8+h] = M[e,f]*M[g,h] : forward blockwise transform (64 -> 64)
    return jnp.einsum("ef,gh->egfh", m, cosine_matrix(BLOCK_SHAPE[1])).reshape(NCOEFF, NCOEFF)


def _forward_transform():
    """(128,128) block-diagonal forward DCT for 2 packed blocks per row (f32)."""
    t = _t64()
    return jnp.kron(jnp.eye(BPR, dtype=t.dtype), t)


def _inverse_transform_fused():
    """(WG*64, 8*WG*8) bf16 matrix: rows (w',p,q), cols (e,w,f), block-diagonal over w.

    Column ordering (e major) makes each 128-lane slice of the matmul output one
    lane-dense image-row strip -> the kernel writes the final image layout directly.
    """
    tinv4 = _t64().T.reshape(8, 8, 8, 8)                    # [p, q, e, f] = M[e,p]*M[f,q]
    eye = jnp.eye(WG, dtype=jnp.float32)
    g = jnp.einsum("vw,pqef->vpqewf", eye, tinv4)           # [w', p, q, e, w, f]
    return g.reshape(WG * NCOEFF, 8 * WG * 8).astype(jnp.bfloat16)


# ----------------------------- compress ------------------------------------
def _compress_tiling(nb):
    nr = pl.cdiv(nb, BPR)                       # packed rows needed
    steps = max(2, pl.cdiv(nr, MAX_TM))         # >=2 steps so v7x megacore can shard
    steps += steps % 2                          # even split across the 2 TensorCores
    tm = _ru(pl.cdiv(nr, steps), 32)            # int8 sublane packing = 32
    nrp = steps * tm
    return tm, nrp, steps


def _compress_kernel(x_ref, t_ref, idx_ref, big_ref):
    # x_ref: (tm, 128) = 2 flattened 8x8 blocks per row; t_ref: (128,128) block-diag DCT.
    c = jnp.dot(x_ref[...], t_ref[...], preferred_element_type=jnp.float32)
    a = jnp.abs(c)
    lane = jax.lax.broadcasted_iota(jnp.int32, c.shape, 1)
    scale = None
    for b in range(BPR):
        lo, hi = b * NCOEFF, (b + 1) * NCOEFF
        big_b = jnp.max(a[:, lo:hi], axis=-1, keepdims=True)       # (tm, 1) inf-norm
        big_ref[:, b:b + 1] = big_b                                 # raw biggest (0 for zero block)
        # exact divide (review: approx reciprocal could shift the max coefficient's bin)
        s_b = jnp.where(big_b > 0.0, INDEX_RADIUS / jnp.maximum(big_b, TINY), 0.0)
        scale = s_b if b == 0 else jnp.where(lane < lo, scale, s_b)
    q = jnp.clip(jnp.round(c * scale), -INDEX_RADIUS, INDEX_RADIUS)
    idx_ref[...] = q.astype(jnp.int8)


def compress(x):
    """PyBlaz Compressor.forward.  Returns (original_shape, biggest_coefficients,
    indicess, mask): indicess (nH, nW, 64) int8, biggest (nH, nW) f32, mask all-True."""
    bh, bw = BLOCK_SHAPE
    H, W = x.shape
    nH, nW = pl.cdiv(H, bh), pl.cdiv(W, bw)
    NB = nH * nW

    # block(): zero-pad to block multiples, split into 8x8 blocks.
    # TODO(synk): fuse this pad/transpose pass into the kernel (extra f32 HBM round trip).
    xp = jnp.pad(x.astype(jnp.float32), ((0, nH * bh - H), (0, nW * bw - W)))
    blocked = xp.reshape(nH, bh, nW, bw).transpose(0, 2, 1, 3).reshape(NB, NCOEFF)

    tm, NRp, steps = _compress_tiling(NB)
    NBp = NRp * BPR
    if NBp > NB:
        blocked = jnp.pad(blocked, ((0, NBp - NB), (0, 0)))
    packed = blocked.reshape(NRp, BPR * NCOEFF)                     # (rows, 128), contiguous

    t_fwd = _forward_transform()

    idx, big = pl.pallas_call(
        _compress_kernel,
        out_shape=(jax.ShapeDtypeStruct((NRp, BPR * NCOEFF), jnp.int8),
                   jax.ShapeDtypeStruct((NRp, BPR), jnp.float32)),
        grid_spec=pltpu.PrefetchScalarGridSpec(
            num_scalar_prefetch=0,
            grid=(steps,),
            in_specs=[pl.BlockSpec((tm, BPR * NCOEFF), lambda i: (i, 0)),
                      pl.BlockSpec((BPR * NCOEFF, BPR * NCOEFF), lambda i: (0, 0))],
            out_specs=[pl.BlockSpec((tm, BPR * NCOEFF), lambda i: (i, 0)),
                       pl.BlockSpec((tm, BPR), lambda i: (i, 0))]),
        compiler_params=pltpu.CompilerParams(
            dimension_semantics=("parallel",),
            vmem_limit_bytes=VMEM_LIMIT),
    )(packed, t_fwd)

    indicess = idx.reshape(NBp, NCOEFF)[:NB].reshape(nH, nW, NCOEFF)
    biggest = big.reshape(NBp)[:NB].reshape(nH, nW)
    mask = jnp.ones(BLOCK_SHAPE, dtype=bool)                        # codec default mask
    return (H, W), biggest, indicess, mask


# ---------------------------- decompress -----------------------------------
def _decompress_tiling(nH, nW):
    nWp = _ru(max(nW, WG), WG)
    col_steps = nWp // WG
    # aim for >=2 total grid steps (v7x 2-TensorCore sharding) when there is enough work
    min_row_steps = 1 if (col_steps >= 2 or nH < 64) else 2
    row_steps = max(min_row_steps, pl.cdiv(nH, MAX_S))
    if row_steps == 1:
        s, nHp = nH, nH
    else:
        s = _ru(pl.cdiv(nH, row_steps), 32)
        nHp = row_steps * s
    return s, nHp, nWp


def _decompress_kernel(idx_ref, big_ref, g_ref, out_ref):
    # idx_ref: (s, WG*64) int8 -- WG blocks per row of this block-row strip.
    # big_ref: (s, WG*8)  f32  -- biggest/127, pre-repeated per pixel column.
    # g_ref  : (WG*64, 8*WG*8) bf16 block-diag inverse DCT, cols ordered (e, w, f).
    # out_ref: (s, 8, WG*8)    f32 -- final image layout (row-block, e, pixel column).
    x = idx_ref[...].astype(jnp.bfloat16)                   # int8 -> bf16 is exact
    y = jnp.dot(x, g_ref[...], preferred_element_type=jnp.float32)
    step = big_ref[...]
    for e in range(BLOCK_SHAPE[0]):                          # static 8-way loop
        lo = e * WG * BLOCK_SHAPE[1]
        out_ref[:, e, :] = y[:, lo:lo + WG * BLOCK_SHAPE[1]] * step


def decompress(original_shape, biggest, indicess, mask):
    """PyBlaz Decompressor.forward for the default all-True mask (fused unblock)."""
    bh, bw = BLOCK_SHAPE
    H, W = original_shape
    nH, nW = biggest.shape
    s, nHp, nWp = _decompress_tiling(nH, nW)

    idx = indicess
    big = biggest.astype(jnp.float32)
    if (nHp, nWp) != (nH, nW):                               # cheap: int8 + small f32 pads
        idx = jnp.pad(idx, ((0, nHp - nH), (0, nWp - nW), (0, 0)))
        big = jnp.pad(big, ((0, nHp - nH), (0, nWp - nW)))
    idx2 = idx.reshape(nHp, nWp * NCOEFF)                    # contiguous reshape -> free
    bigrep = jnp.repeat(big * (1.0 / INDEX_RADIUS), bw, axis=1)   # (nHp, nWp*8) per-column scale

    g = _inverse_transform_fused()

    out = pl.pallas_call(
        _decompress_kernel,
        out_shape=jax.ShapeDtypeStruct((nHp, bh, nWp * bw), jnp.float32),
        grid_spec=pltpu.PrefetchScalarGridSpec(
            num_scalar_prefetch=0,
            grid=(nHp // s, nWp // WG),
            in_specs=[pl.BlockSpec((s, WG * NCOEFF), lambda i, j: (i, j)),
                      pl.BlockSpec((s, WG * bw), lambda i, j: (i, j)),
                      pl.BlockSpec((WG * NCOEFF, bh * WG * bw), lambda i, j: (0, 0))],
            out_specs=pl.BlockSpec((s, bh, WG * bw), lambda i, j: (i, 0, j))),
        compiler_params=pltpu.CompilerParams(
            dimension_semantics=("parallel", "parallel"),
            vmem_limit_bytes=VMEM_LIMIT),
    )(idx2, bigrep, g)

    full = out.reshape(nHp * bh, nWp * bw)                   # contiguous reshape -> free
    return full[:H, :W]


if __name__ == "__main__":
    key = jax.random.PRNGKey(0)
    x = jax.random.normal(key, (62, 44), dtype=jnp.float32)        # exercises zero-padding

    original_shape, biggest, indicess, mask = compress(x)
    jax.block_until_ready((biggest, indicess))

    # ---- plain-JAX reference: compress ----
    bh, bw = BLOCK_SHAPE
    H, W = x.shape
    nH, nW = -(-H // bh), -(-W // bw)
    M8 = cosine_matrix(bh)
    xp = jnp.pad(x, ((0, nH * bh - H), (0, nW * bw - W)))
    blk = xp.reshape(nH, bh, nW, bw).transpose(0, 2, 1, 3)
    coeffs = jnp.einsum("ijef,ep,fq->ijpq", blk, M8, cosine_matrix(bw)).reshape(nH, nW, NCOEFF)
    ref_big = jnp.max(jnp.abs(coeffs), axis=-1)
    ref_idx = jnp.round(coeffs * (INDEX_RADIUS / ref_big[..., None])).astype(jnp.int32)
    assert jnp.allclose(biggest, ref_big, rtol=1e-5, atol=1e-5)
    assert int(jnp.max(jnp.abs(indicess.astype(jnp.int32) - ref_idx))) <= 1

    # ---- decompress kernel + plain-JAX f32 reference on the same compressed data ----
    y = decompress(original_shape, biggest, indicess, mask)
    jax.block_until_ready(y)

    c_ref = indicess.astype(jnp.float32).reshape(nH, nW, bh, bw) * \
        (biggest / INDEX_RADIUS)[..., None, None]
    blocks_ref = jnp.einsum("ijpq,ep,fq->ijef", c_ref, M8, cosine_matrix(bw))
    y_ref = blocks_ref.transpose(0, 2, 1, 3).reshape(nH * bh, nW * bw)[:H, :W]
    assert y.shape == x.shape
    # The fused kernel runs the inverse DCT in bf16 (int8 operand is exact; the transform
    # matrix rounds to bf16).  That error (<~1e-2 abs here) is well below the codec's own
    # int8 quantization error, so the tolerance below reflects the bf16 transform only.
    diff = jnp.abs(y - y_ref)
    assert float(jnp.max(diff)) < 3e-2
    assert float(jnp.mean(diff)) < 8e-3

    print("KERNEL_OK")
</pallas_src>

<mosaic_0001>
module attributes {stable_mosaic.version = 11 : i64} {
  func.func @_compress_kernel(%arg0: i32, %arg1: memref<32x128xf32, #tpu.memory_space<vmem>>, %arg2: memref<128x128xf32, #tpu.memory_space<vmem>>, %arg3: memref<32x128xi8, #tpu.memory_space<vmem>>, %arg4: memref<32x2xf32, #tpu.memory_space<vmem>>) attributes {dimension_semantics = [#tpu.dimension_semantics<parallel>], iteration_bounds = array<i64: 2>, scalar_prefetch = 0 : i64, scratch_operands = 0 : i64, tpu.core_type = #tpu.core_type<tc>, window_params = [{transform_indices = @transform_0, window_bounds = array<i64: 32, 128>}, {pipeline_mode = #tpu.pipeline_mode<synchronous>, transform_indices = @transform_1, window_bounds = array<i64: 128, 128>}, {transform_indices = @transform_2, window_bounds = array<i64: 32, 128>}, {transform_indices = @transform_3, window_bounds = array<i64: 32, 2>}]} {
    %c0 = arith.constant 0 : index
    %c0_0 = arith.constant 0 : index
    %0 = vector.load %arg1[%c0, %c0_0] : memref<32x128xf32, #tpu.memory_space<vmem>>, vector<32x128xf32>
    %c0_1 = arith.constant 0 : index
    %c0_2 = arith.constant 0 : index
    %1 = vector.load %arg2[%c0_1, %c0_2] : memref<128x128xf32, #tpu.memory_space<vmem>>, vector<128x128xf32>
    %cst = arith.constant dense<0.000000e+00> : vector<32x128xf32>
    %2 = tpu.matmul %0, %1, %cst {dimension_numbers = #tpu.dot_dimension_numbers<[1], [0], [0], [1], [0, 0, 1, 1], [], []>} : vector<32x128xf32>, vector<128x128xf32>, vector<32x128xf32> -> vector<32x128xf32>
    %3 = math.absf %2 : vector<32x128xf32>
    %4 = tpu.iota {dimensions = array<i32: 1>} : vector<32x128xi32>
    %5 = vector.extract_strided_slice %3 {offsets = [0, 0], sizes = [32, 64], strides = [1, 1]} : vector<32x128xf32> to vector<32x64xf32>
    %cst_3 = arith.constant dense<0xFF800000> : vector<32xf32>
    %6 = vector.multi_reduction <maximumf>, %5, %cst_3 [1] : vector<32x64xf32> to vector<32xf32>
    %7 = vector.shape_cast %6 : vector<32xf32> to vector<32x1xf32>
    %c0_4 = arith.constant 0 : index
    %c0_5 = arith.constant 0 : index
    %8 = vector.load %arg4[%c0_4, %c0_5] : memref<32x2xf32, #tpu.memory_space<vmem>>, vector<32x1xf32>
    tpu.vector_store %arg4[%c0_4, %c0_5], %7 {strides = array<i32>} : memref<32x2xf32, #tpu.memory_space<vmem>>, vector<32x1xf32>,
    %cst_6 = arith.constant 0.000000e+00 : f32
    %9 = vector.broadcast %cst_6 : f32 to vector<32x1xf32>
    %10 = arith.cmpf ogt, %7, %9 : vector<32x1xf32>
    %cst_7 = arith.constant 1.000000e-30 : f32
    %11 = vector.broadcast %cst_7 : f32 to vector<32x1xf32>
    %12 = arith.maximumf %7, %11 : vector<32x1xf32>
    %cst_8 = arith.constant 1.270000e+02 : f32
    %13 = vector.broadcast %cst_8 : f32 to vector<32x1xf32>
    %14 = arith.divf %13, %12 : vector<32x1xf32>
    %cst_9 = arith.constant 0.000000e+00 : f32
    %15 = vector.broadcast %cst_9 : f32 to vector<32x1xf32>
    %16 = arith.select %10, %14, %15 : vector<32x1xi1>, vector<32x1xf32>
    %17 = vector.extract_strided_slice %3 {offsets = [0, 64], sizes = [32, 64], strides = [1, 1]} : vector<32x128xf32> to vector<32x64xf32>
    %cst_10 = arith.constant dense<0xFF800000> : vector<32xf32>
    %18 = vector.multi_reduction <maximumf>, %17, %cst_10 [1] : vector<32x64xf32> to vector<32xf32>
    %19 = vector.shape_cast %18 : vector<32xf32> to vector<32x1xf32>
    %c0_11 = arith.constant 0 : index
    %c1 = arith.constant 1 : index
    %20 = vector.load %arg4[%c0_11, %c1] : memref<32x2xf32, #tpu.memory_space<vmem>>, vector<32x1xf32>
    tpu.vector_store %arg4[%c0_11, %c1], %19 {strides = array<i32>} : memref<32x2xf32, #tpu.memory_space<vmem>>, vector<32x1xf32>,
    %cst_12 = arith.constant 0.000000e+00 : f32
    %21 = vector.broadcast %cst_12 : f32 to vector<32x1xf32>
    %22 = arith.cmpf ogt, %19, %21 : vector<32x1xf32>
    %cst_13 = arith.constant 1.000000e-30 : f32
    %23 = vector.broadcast %cst_13 : f32 to vector<32x1xf32>
    %24 = arith.maximumf %19, %23 : vector<32x1xf32>
    %cst_14 = arith.constant 1.270000e+02 : f32
    %25 = vector.broadcast %cst_14 : f32 to vector<32x1xf32>
    %26 = arith.divf %25, %24 : vector<32x1xf32>
    %cst_15 = arith.constant 0.000000e+00 : f32
    %27 = vector.broadcast %cst_15 : f32 to vector<32x1xf32>
    %28 = arith.select %22, %26, %27 : vector<32x1xi1>, vector<32x1xf32>
    %c64_i32 = arith.constant 64 : i32
    %29 = vector.broadcast %c64_i32 : i32 to vector<32x128xi32>
    %30 = arith.cmpi slt, %4, %29 : vector<32x128xi32>
    %31 = vector.shape_cast %16 : vector<32x1xf32> to vector<32x1xf32>
    %32 = vector.broadcast %31 : vector<32x1xf32> to vector<32x128xf32>
    %33 = vector.shape_cast %28 : vector<32x1xf32> to vector<32x1xf32>
    %34 = vector.broadcast %33 : vector<32x1xf32> to vector<32x128xf32>
    %35 = arith.select %30, %32, %34 : vector<32x128xi1>, vector<32x128xf32>
    %36 = arith.mulf %2, %35 : vector<32x128xf32>
    %37 = math.roundeven %36 : vector<32x128xf32>
    %cst_16 = arith.constant -1.270000e+02 : f32
    %cst_17 = arith.constant 1.270000e+02 : f32
    %38 = vector.broadcast %cst_16 : f32 to vector<32x128xf32>
    %39 = arith.maximumf %38, %37 : vector<32x128xf32>
    %40 = vector.broadcast %cst_17 : f32 to vector<32x128xf32>
    %41 = arith.minimumf %40, %39 : vector<32x128xf32>
    %42 = arith.fptosi %41 : vector<32x128xf32> to vector<32x128xi8>
    %c0_18 = arith.constant 0 : index
    %c0_19 = arith.constant 0 : index
    %43 = vector.load %arg3[%c0_18, %c0_19] : memref<32x128xi8, #tpu.memory_space<vmem>>, vector<32x128xi8>
    tpu.vector_store %arg3[%c0_18, %c0_19], %42 {strides = array<i32>} : memref<32x128xi8, #tpu.memory_space<vmem>>, vector<32x128xi8>,
    return
  }
  func.func @transform_0(%arg0: i32) -> (i32, i32) {
    %c0_i32 = arith.constant 0 : i32
    %c0_i32_0 = arith.constant 0 : i32
    return %arg0, %c0_i32 : i32, i32
  }
  func.func @transform_1(%arg0: i32) -> (i32, i32) {
    %c0_i32 = arith.constant 0 : i32
    %c0_i32_0 = arith.constant 0 : i32
    %c0_i32_1 = arith.constant 0 : i32
    return %c0_i32, %c0_i32_0 : i32, i32
  }
  func.func @transform_2(%arg0: i32) -> (i32, i32) {
    %c0_i32 = arith.constant 0 : i32
    %c0_i32_0 = arith.constant 0 : i32
    return %arg0, %c0_i32 : i32, i32
  }
  func.func @transform_3(%arg0: i32) -> (i32, i32) {
    %c0_i32 = arith.constant 0 : i32
    %c0_i32_0 = arith.constant 0 : i32
    return %arg0, %c0_i32 : i32, i32
  }
}

</mosaic_0001>

<llo_original>
// kernel: tpu_custom_call.1
$region0: #{tpu_custom_call.1}
  #allocation0 [shape = 'u32[]', space=smem, size = 0x4, offset = 0x4, fixed_abs, tag = 'smem constant byte address 0x4 - core index']
  #allocation1 [shape = 'u32[144,128]{1,0:T(1,128)}', space=vmem, size = 0x12000, scoped, tag = 'internal scratch']
  %s0 = inlined_call_operand.hbm [shape: f32[64,128], index: 0, kind: input, shape index: {}]
  %s1 = inlined_call_operand.hbm [shape: f32[128,128], index: 1, kind: input, shape index: {}]
  %s2 = inlined_call_operand.hbm [shape: s8[64,128], index: 2, kind: output, shape index: {0}]
  %s3 = inlined_call_operand.vmem [shape: f32[64,2], index: 3, kind: output, shape index: {1}]
  %4 = xla_tuple %s2, %s3
  %s5 = sld [smem:[#allocation0]]
  $region57: #{tpu_custom_call.1} parent=0
    _
  %s7 = ssub.s32 1, %s5
  %s8 = scalar_select 0, %s7, %s5
  $region1: #{tpu_custom_call.1} parent=0
    #allocation2 [shape = 'u8[32768]{0}', space=vmem, size = 0x8000, scoped, tag = 'input window, operand 0']
    #allocation3 [shape = 's32[2]{0}', space=sflag, size = 0x8, scoped, tag = 'scoped memory for tpu_custom_call.1']
    #allocation4 [shape = 's32[2]{0}', space=sflag, size = 0x8, scoped, tag = 'scoped memory for tpu_custom_call.1']
    #allocation5 [shape = 'u8[65536]{0}', space=vmem, size = 0x10000, scoped, tag = 'input window, operand 1, single buffered']
    #allocation6 [shape = 's32[1]{0}', space=sflag, size = 0x4, scoped, tag = 'scoped memory for tpu_custom_call.1']
    #allocation7 [shape = 'u8[8192]{0}', space=vmem, size = 0x2000, scoped, tag = 'output window, operand 0']
    %9 = vsyncpa [#allocation3], 0
    %s10 = scalar_lea.sflag [#allocation3], 1
    %11 = vsyncpa %s10, 0
    %12 = vsyncpa [#allocation6], 0
    %13 = vsyncpa [#allocation4], 0
    %s14 = scalar_lea.sflag [#allocation4], 1
    %15 = vsyncpa %s14, 0
    loop: start=0, step=1, limit=4
    $region2: #{tpu_custom_call.1} parent=1 // loop_pre_header
      _
    $region3: #{tpu_custom_call.1} parent=1 // loop_header
      %s17 = sphi 0, %s21
      %p18 = scmp.ge.s32.totalorder %s17, 4
      %s27 = sphi 0, %s29
      %s30 = sphi 0, %s27
      %s31 = sphi 0, %s30
      %s47 = sphi 0, %s31
      %s51 = sphi 0, %s51
      %s53 = sphi 0, %s51
      %s54 = sphi 0, %s53
      %s68 = sphi 0, %s54
      %s74 = sphi 0, %s76
      %s77 = sphi 0, %s74
      %s78 = sphi 0, %s77
      %s94 = sphi 0, %s78
      %s100 = sphi 0, %s102
      %s103 = sphi 0, %s100
      %s104 = sphi 0, %s103
      %s120 = sphi 0, %s104
    $region4: #{tpu_custom_call.1} parent=1 // loop_header_branch
      %20 = sbr.rel (%p18) target = $region8
    $region5: #{tpu_custom_call.1} parent=1 // loop_body
      %s22 = ssub.s32 %s17, 1
      %s23 = ssub.s32 %s17, 2
      %s24 = sadd.s32 %s17, 1
      %s25 = ssub.s32 %s17, %s24
      %p26 = scmp.eq.s32.totalorder %s25, 0
      %s28 = sadd.s32 %s27, 1
      %s29 = scalar_select %p26, %s27, %s28
      %p32 = pneg %p26
      %p33 = scmp.eq.s32.totalorder %s17, 1
      %p34 = por %p32, %p33
      %p35 = scmp.ne.s32.totalorder %s27, %s30
      %p36 = scmp.eq.s32.totalorder %s17, 0
      %p37 = por %p35, %p36
      %p38 = scmp.ne.s32.totalorder %s27, %s30
      %p39 = scmp.eq.s32.totalorder %s22, 1
      %p40 = por %p38, %p39
      %p41 = scmp.ne.s32.totalorder %s30, %s31
      %p42 = scmp.eq.s32.totalorder %s22, 0
      %p43 = por %p41, %p42
      %p44 = scmp.ne.s32.totalorder %s30, %s31
      %p45 = scmp.eq.s32.totalorder %s23, 1
      %p46 = por %p44, %p45
      %p48 = scmp.ne.s32.totalorder %s31, %s47
      %p49 = scmp.eq.s32.totalorder %s23, 0
      %p50 = por %p48, %p49
      %s52 = sadd.s32 %s51, 1
      %p55 = scmp.eq.s32.totalorder %s17, 1
      %p56 = scmp.ne.s32.totalorder %s51, %s53
      %p57 = scmp.eq.s32.totalorder %s17, 0
      %p58 = por %p56, %p57
      %p59 = scmp.ne.s32.totalorder %s51, %s53
      %p60 = scmp.eq.s32.totalorder %s22, 1
      %p61 = por %p59, %p60
      %p62 = scmp.ne.s32.totalorder %s53, %s54
      %p63 = scmp.eq.s32.totalorder %s22, 0
      %p64 = por %p62, %p63
      %p65 = scmp.ne.s32.totalorder %s53, %s54
      %p66 = scmp.eq.s32.totalorder %s23, 1
      %p67 = por %p65, %p66
      %p69 = scmp.ne.s32.totalorder %s54, %s68
      %p70 = scmp.eq.s32.totalorder %s23, 0
      %p71 = por %p69, %p70
      %s72 = ssub.s32 %s17, %s24
      %p73 = scmp.eq.s32.totalorder %s72, 0
      %s75 = sadd.s32 %s74, 1
      %s76 = scalar_select %p73, %s74, %s75
      %p79 = pneg %p73
      %p80 = scmp.eq.s32.totalorder %s17, 1
      %p81 = por %p79, %p80
      %p82 = scmp.ne.s32.totalorder %s74, %s77
      %p83 = scmp.eq.s32.totalorder %s17, 0
      %p84 = por %p82, %p83
      %p85 = scmp.ne.s32.totalorder %s74, %s77
      %p86 = scmp.eq.s32.totalorder %s22, 1
      %p87 = por %p85, %p86
      %p88 = scmp.ne.s32.totalorder %s77, %s78
      %p89 = scmp.eq.s32.totalorder %s22, 0
      %p90 = por %p88, %p89
      %p91 = scmp.ne.s32.totalorder %s77, %s78
      %p92 = scmp.eq.s32.totalorder %s23, 1
      %p93 = por %p91, %p92
      %p95 = scmp.ne.s32.totalorder %s78, %s94
      %p96 = scmp.eq.s32.totalorder %s23, 0
      %p97 = por %p95, %p96
      %s98 = ssub.s32 %s17, %s24
      %p99 = scmp.eq.s32.totalorder %s98, 0
      %s101 = sadd.s32 %s100, 1
      %s102 = scalar_select %p99, %s100, %s101
      %p105 = pneg %p99
      %p106 = scmp.eq.s32.totalorder %s17, 1
      %p107 = por %p105, %p106
      %p108 = scmp.ne.s32.totalorder %s100, %s103
      %p109 = scmp.eq.s32.totalorder %s17, 0
      %p110 = por %p108, %p109
      %p111 = scmp.ne.s32.totalorder %s100, %s103
      %p112 = scmp.eq.s32.totalorder %s22, 1
      %p113 = por %p111, %p112
      %p114 = scmp.ne.s32.totalorder %s103, %s104
      %p115 = scmp.eq.s32.totalorder %s22, 0
      %p116 = por %p114, %p115
      %p117 = scmp.ne.s32.totalorder %s103, %s104
      %p118 = scmp.eq.s32.totalorder %s23, 1
      %p119 = por %p117, %p118
      %p121 = scmp.ne.s32.totalorder %s104, %s120
      %p122 = scmp.eq.s32.totalorder %s23, 0
      %p123 = por %p121, %p122
      %p124 = scmp.le.s32.totalorder 1, %s17
      %p125 = scmp.lt.s32.totalorder %s17, 3
      %p126 = pnand %p124, %p125
      %p127 = pneg %p126
      // Predicated region
      $region9: #{tpu_custom_call.1} parent=5 // pred_check
        _
      $region10: #{tpu_custom_call.1} parent=5 // pred_check_branch
        %129 = sbr.rel (%p126) target = $region12
      $region11: #{tpu_custom_call.1} parent=5 // pred_region
        %s130 = ssub.s32 %s17, 1
        // Predicated region
        $region13: #{tpu_custom_call.1} parent=11 // pred_check
          %p131 = pneg %p64
        $region14: #{tpu_custom_call.1} parent=11 // pred_check_branch
          %133 = sbr.rel (%p131) target = $region16
        $region15: #{tpu_custom_call.1} parent=11 // pred_region
          %s135 = ssub.s32 2048, 2048
          %136 = vsyncadd [#allocation6], %s135
          %s137 = sshll.u32 [#allocation5], 4
          %s138 = int_to_ptr.vmem [resolvable:$true] %s137
          %143 = dma.hbm_to_vmem [thread:$0]  %s1, 2048, %s138, [#allocation6], 128, 128, 8
        $region16: #{tpu_custom_call.1} parent=11 // pred_fallthru
          _
      $region12: #{tpu_custom_call.1} parent=5 // pred_fallthru
        _
      %p144 = scmp.lt.s32.totalorder %s17, 2
      // Predicated region
      $region17: #{tpu_custom_call.1} parent=5 // pred_check
        %p145 = pneg %p144
      $region18: #{tpu_custom_call.1} parent=5 // pred_check_branch
        %147 = sbr.rel (%p145) target = $region20
      $region19: #{tpu_custom_call.1} parent=5 // pred_region
        // Predicated region
        $region21: #{tpu_custom_call.1} parent=19 // pred_check
          %p148 = pneg %p37
        $region22: #{tpu_custom_call.1} parent=19 // pred_check_branch
          %150 = sbr.rel (%p148) target = $region24
        $region23: #{tpu_custom_call.1} parent=19 // pred_region
          %s151 = sand.u32 %s27, 1
          %s152 = scalar_lea.sflag [#allocation3], %s151
          %s153 = sand.u32 %s27, 1
          %s154 = smul.addr %s153, 32
          %s155 = scalar_lea.vmem [#allocation2], %s154
          %s156 = smul.u32 4, %s17
          %s158 = ssub.s32 512, 512
          %159 = vsyncadd %s152, %s158
          %s160 = smul.addr %s156, 128
          %s161 = scalar_lea.hbm %s0, %s160
          %s162 = sshll.u32 %s155, 4
          %s163 = int_to_ptr.vmem [resolvable:$true] %s162
          %168 = dma.hbm_to_vmem [thread:$0]  %s161, 512, %s163, %s152, 128, 128, 8
        $region24: #{tpu_custom_call.1} parent=19 // pred_fallthru
          _
      $region20: #{tpu_custom_call.1} parent=5 // pred_fallthru
        _
      %p169 = scmp.le.s32.totalorder 1, %s17
      %p170 = scmp.lt.s32.totalorder %s17, 3
      %p171 = pnand %p169, %p170
      %p172 = pneg %p171
      // Predicated region
      $region25: #{tpu_custom_call.1} parent=5 // pred_check
        _
      $region26: #{tpu_custom_call.1} parent=5 // pred_check_branch
        %174 = sbr.rel (%p171) target = $region28
      $region27: #{tpu_custom_call.1} parent=5 // pred_region
        %s175 = ssub.s32 %s17, 1
        %s176 = sand.u32 %s30, 1
        %s177 = scalar_lea.sflag [#allocation3], %s176
        %s178 = sand.u32 %s30, 1
        %s179 = smul.addr %s178, 32
        %s180 = scalar_lea.vmem [#allocation2], %s179
        // Predicated region
        $region29: #{tpu_custom_call.1} parent=27 // pred_check
          %p181 = pneg %p43
        $region30: #{tpu_custom_call.1} parent=27 // pred_check_branch
          %183 = sbr.rel (%p181) target = $region32
        $region31: #{tpu_custom_call.1} parent=27 // pred_region
          %184 = dma.done %s177, 512
        $region32: #{tpu_custom_call.1} parent=27 // pred_fallthru
          _
        // Predicated region
        $region33: #{tpu_custom_call.1} parent=27 // pred_check
          %p185 = pneg %p64
        $region34: #{tpu_custom_call.1} parent=27 // pred_check_branch
          %187 = sbr.rel (%p185) target = $region36
        $region35: #{tpu_custom_call.1} parent=27 // pred_region
          %188 = dma.done [#allocation6], 2048
        $region36: #{tpu_custom_call.1} parent=27 // pred_fallthru
          _
        %s189 = sand.u32 %s30, 1
        %s190 = scalar_lea.sflag [#allocation3], %s189
        %s191 = sand.u32 %s30, 1
        %s192 = smul.addr %s191, 32
        %s193 = scalar_lea.vmem [#allocation2], %s192
        %p194 = pneg %p43
        %p195 = pneg %p40
        %p196 = pneg %p64
        %p197 = pneg %p61
        %p198 = pneg %p90
        %p199 = pneg %p87
        %s200 = sand.u32 %s77, 1
        %s201 = scalar_lea.sflag [#allocation4], %s200
        %s202 = sand.u32 %s77, 1
        %s203 = smul.addr %s202, 8
        %s204 = scalar_lea.vmem [#allocation7], %s203
        %p205 = pneg %p116
        %p206 = pneg %p113
        %s207 = smul.u32 4, %s22
        %p208 = scmp.lt.s32.totalorder %s207, 7
        %s209 = scalar_select %p208, %s207, 7
        %s210 = smul.addr %s209, 8
        %s211 = scalar_lea.vmem %s3, %s210
        %s212 = smul.u32 4, %s22
        %s213 = smul.u32 4, %s22
        %p214 = scmp.lt.s32.totalorder %s213, 7
        %s215 = scalar_select %p214, %s213, 7
        %s216 = smul.addr %s215, 8
        %s217 = scalar_lea.vmem %s3, %s216
        %s218 = smul.u32 4, %s22
        %v219 = vld [vmem:[%s180] sm:$0xff]
        %v220 = vld [vmem:[%s180 + $0x8] sm:$0xff]
        %v221 = vld [vmem:[%s180 + $0x10] sm:$0xff]
        %v222 = vld [vmem:[%s180 + $0x18] sm:$0xff]
        %v223 = vld [vmem:[#allocation5] sm:$0xff]
        %v224 = vld [vmem:[#allocation5 + $0x8] sm:$0xff]
        %v225 = vld [vmem:[#allocation5 + $0x10] sm:$0xff]
        %v226 = vld [vmem:[#allocation5 + $0x18] sm:$0xff]
        %v227 = vld [vmem:[#allocation5 + $0x20] sm:$0xff]
        %v228 = vld [vmem:[#allocation5 + $0x28] sm:$0xff]
        %v229 = vld [vmem:[#allocation5 + $0x30] sm:$0xff]
        %v230 = vld [vmem:[#allocation5 + $0x38] sm:$0xff]
        %v231 = vld [vmem:[#allocation5 + $0x40] sm:$0xff]
        %v232 = vld [vmem:[#allocation5 + $0x48] sm:$0xff]
        %v233 = vld [vmem:[#allocation5 + $0x50] sm:$0xff]
        %v234 = vld [vmem:[#allocation5 + $0x58] sm:$0xff]
        %v235 = vld [vmem:[#allocation5 + $0x60] sm:$0xff]
        %v236 = vld [vmem:[#allocation5 + $0x68] sm:$0xff]
        %v237 = vld [vmem:[#allocation5 + $0x70] sm:$0xff]
        %v238 = vld [vmem:[#allocation5 + $0x78] sm:$0xff]
        %239 = vmatprep.subr.mxu0 0.0
        %240 = vmatpush1.msra.mxu0 %v238
        %241 = vmatprep.subr.mxu0 0.0
        %242 = vmatpush1.msra.mxu0 %v237
        %243 = vmatprep.subr.mxu0 0.0
        %244 = vmatpush1.msra.mxu0 %v236
        %245 = vmatprep.subr.mxu0 0.0
        %246 = vmatpush1.msra.mxu0 %v235
        %247 = vmatprep.subr.mxu0 0.0
        %248 = vmatpush1.msra.mxu0 %v234
        %249 = vmatprep.subr.mxu0 0.0
        %250 = vmatpush1.msra.mxu0 %v233
        %251 = vmatprep.subr.mxu0 0.0
        %252 = vmatpush1.msra.mxu0 %v232
        %253 = vmatprep.subr.mxu0 0.0
        %254 = vmatpush1.msra.mxu0 %v231
        %255 = vmatprep.subr.mxu0 0.0
        %256 = vmatpush1.msra.mxu0 %v230
        %257 = vmatprep.subr.mxu0 0.0
        %258 = vmatpush1.msra.mxu0 %v229
        %259 = vmatprep.subr.mxu0 0.0
        %260 = vmatpush1.msra.mxu0 %v228
        %261 = vmatprep.subr.mxu0 0.0
        %262 = vmatpush1.msra.mxu0 %v227
        %263 = vmatprep.subr.mxu0 0.0
        %264 = vmatpush1.msra.mxu0 %v226
        %265 = vmatprep.subr.mxu0 0.0
        %266 = vmatpush1.msra.mxu0 %v225
        %267 = vmatprep.subr.mxu0 0.0
        %268 = vmatpush1.msra.mxu0 %v224
        %269 = vmatprep.subr.mxu0 0.0
        %270 = vmatpush1.msra.mxu0 %v223
        %271 = vmatprep.subr.mxu0 0.0
        %272 = vmatpush2.msra.mxu0 0.0
        %273 = vmatprep.subr.mxu0 0.0
        %274 = vmatpush2.msra.mxu0 0.0
        %275 = vmatprep.subr.mxu0 0.0
        %276 = vmatpush2.msra.mxu0 0.0
        %277 = vmatprep.subr.mxu0 0.0
        %278 = vmatpush2.msra.mxu0 0.0
        %279 = vmatprep.subr.mxu0 0.0
        %280 = vmatpush2.msra.mxu0 0.0
        %281 = vmatprep.subr.mxu0 0.0
        %282 = vmatpush2.msra.mxu0 0.0
        %283 = vmatprep.subr.mxu0 0.0
        %284 = vmatpush2.msra.mxu0 0.0
        %285 = vmatprep.subr.mxu0 0.0
        %286 = vmatpush2.msra.mxu0 0.0
        %287 = vmatprep.subr.mxu0 0.0
        %288 = vmatpush2.msra.mxu0 0.0
        %289 = vmatprep.subr.mxu0 0.0
        %290 = vmatpush2.msra.mxu0 0.0
        %291 = vmatprep.subr.mxu0 0.0
        %292 = vmatpush2.msra.mxu0 0.0
        %293 = vmatprep.subr.mxu0 0.0
        %294 = vmatpush2.msra.mxu0 0.0
        %295 = vmatprep.subr.mxu0 0.0
        %296 = vmatpush2.msra.mxu0 0.0
        %297 = vmatprep.subr.mxu0 0.0
        %298 = vmatpush2.msra.mxu0 0.0
        %299 = vmatprep.subr.mxu0 0.0
        %300 = vmatpush2.msra.mxu0 0.0
        %301 = vmatprep.subr.mxu0 0.0
        %302 = vmatpush2.msra.mxu0 0.0
        %303 = vmatprep.mubr.f32.mxu0 0.0
        %304 = vmatmul.mubr.f32.gmra.mxu0 %v219
        %v305 = vpop.f32.mrf.mxu0
        %v306 = vadd.f32 0.0, %v305
        %v307 = vpop.f32.mrf.mxu0
        %308 = vmatprep.mubr.f32.mxu0 0.0
        %309 = vmatmul.mubr.f32.gmra.mxu0 %v220
        %v310 = vpop.f32.mrf.mxu0
        %v311 = vadd.f32 0.0, %v310
        %v312 = vpop.f32.mrf.mxu0
        %313 = vmatprep.mubr.f32.mxu0 0.0
        %314 = vmatmul.mubr.f32.gmra.mxu0 %v221
        %v315 = vpop.f32.mrf.mxu0
        %v316 = vadd.f32 0.0, %v315
        %v317 = vpop.f32.mrf.mxu0
        %318 = vmatprep.mubr.f32.mxu0 0.0
        %319 = vmatmul.mubr.f32.gmra.mxu0 %v222
        %v320 = vpop.f32.mrf.mxu0
        %v321 = vadd.f32 0.0, %v320
        %v322 = vpop.f32.mrf.mxu0
        %323 = vdwg.mxu0
        %v324 = vand.u32 2147483647, %v306
        %v325 = vand.u32 2147483647, %v311
        %v326 = vand.u32 2147483647, %v316
        %v327 = vand.u32 2147483647, %v321
        %v328 = vlaneseq
        %v329 = vand.u32 %v328, 127
        %vm330 = vcmask 523264
        %v331 = vsel %vm330, %v324, -inf
        %332 = vmax.xlane.f32.xlu0 %v331
        %v333 = vpop.xlane.xlu0 %332
        %v334 = vsel %vm330, %v325, -inf
        %335 = vmax.xlane.f32.xlu0 %v334
        %v336 = vpop.xlane.xlu0 %335
        %v337 = vsel %vm330, %v326, -inf
        %338 = vmax.xlane.f32.xlu0 %v337
        %v339 = vpop.xlane.xlu0 %338
        %v340 = vsel %vm330, %v327, -inf
        %341 = vmax.xlane.f32.xlu0 %v340
        %v342 = vpop.xlane.xlu0 %341
        %vm343 = vcmask 7168
        %344 = vst.msk [vmem:[%s217] sm:$0xff] %vm343, %v333
        %345 = vst.msk [vmem:[%s217 + $0x8] sm:$0xff] %vm343, %v336
        %346 = vst.msk [vmem:[%s217 + $0x10] sm:$0xff] %vm343, %v339
        %347 = vst.msk [vmem:[%s217 + $0x18] sm:$0xff] %vm343, %v342
        %vm348 = vcmp.gt.f32.partialorder %v333, 0.0
        %vm349 = vcmp.gt.f32.partialorder %v336, 0.0
        %vm350 = vcmp.gt.f32.partialorder %v339, 0.0
        %vm351 = vcmp.gt.f32.partialorder %v342, 0.0
        %v352 = vmax.f32 %v333, 1e-30
        %v353 = vmax.f32 %v336, 1e-30
        %v354 = vmax.f32 %v339, 1e-30
        %v355 = vmax.f32 %v342, 1e-30
        %v356 = vrcp.pop %v352
        %v357 = vmul.f32 127.0, %v356
        %v358 = vrcp.pop %v353
        %v359 = vmul.f32 127.0, %v358
        %v360 = vrcp.pop %v354
        %v361 = vmul.f32 127.0, %v360
        %v362 = vrcp.pop %v355
        %v363 = vmul.f32 127.0, %v362
        %v364 = vsel %vm348, %v357, 0.0
        %v365 = vsel %vm349, %v359, 0.0
        %v366 = vsel %vm350, %v361, 0.0
        %v367 = vsel %vm351, %v363, 0.0
        %vm368 = vcmask 1048064
        %v369 = vsel %vm368, %v324, -inf
        %370 = vmax.xlane.f32.xlu0 %v369
        %v371 = vpop.xlane.xlu0 %370
        %v372 = vsel %vm368, %v325, -inf
        %373 = vmax.xlane.f32.xlu0 %v372
        %v374 = vpop.xlane.xlu0 %373
        %v375 = vsel %vm368, %v326, -inf
        %376 = vmax.xlane.f32.xlu0 %v375
        %v377 = vpop.xlane.xlu0 %376
        %v378 = vsel %vm368, %v327, -inf
        %379 = vmax.xlane.f32.xlu0 %v378
        %v380 = vpop.xlane.xlu0 %379
        %vm381 = vcmask 15368
        %382 = vst.msk [vmem:[%s217] sm:$0xff] %vm381, %v371
        %383 = vst.msk [vmem:[%s217 + $0x8] sm:$0xff] %vm381, %v374
        %384 = vst.msk [vmem:[%s217 + $0x10] sm:$0xff] %vm381, %v377
        %385 = vst.msk [vmem:[%s217 + $0x18] sm:$0xff] %vm381, %v380
        %vm386 = vcmp.gt.f32.partialorder %v371, 0.0
        %vm387 = vcmp.gt.f32.partialorder %v374, 0.0
        %vm388 = vcmp.gt.f32.partialorder %v377, 0.0
        %vm389 = vcmp.gt.f32.partialorder %v380, 0.0
        %v390 = vmax.f32 %v371, 1e-30
        %v391 = vmax.f32 %v374, 1e-30
        %v392 = vmax.f32 %v377, 1e-30
        %v393 = vmax.f32 %v380, 1e-30
        %v394 = vrcp.pop %v390
        %v395 = vmul.f32 127.0, %v394
        %v396 = vrcp.pop %v391
        %v397 = vmul.f32 127.0, %v396
        %v398 = vrcp.pop %v392
        %v399 = vmul.f32 127.0, %v398
        %v400 = vrcp.pop %v393
        %v401 = vmul.f32 127.0, %v400
        %v402 = vsel %vm386, %v395, 0.0
        %v403 = vsel %vm387, %v397, 0.0
        %v404 = vsel %vm388, %v399, 0.0
        %v405 = vsel %vm389, %v401, 0.0
        %vm406 = vcmp.lt.s32.totalorder %v329, 64
        %v407 = vsel %vm406, %v364, %v402
        %v408 = vsel %vm406, %v365, %v403
        %v409 = vsel %vm406, %v366, %v404
        %v410 = vsel %vm406, %v367, %v405
        %v411 = vmul.f32 %v306, %v407
        %v412 = vmul.f32 %v311, %v408
        %v413 = vmul.f32 %v316, %v409
        %v414 = vmul.f32 %v321, %v410
        %v415 = vround.ne.pseudo %v411
        %v416 = vround.ne.pseudo %v412
        %v417 = vround.ne.pseudo %v413
        %v418 = vround.ne.pseudo %v414
        %v419 = vmax.f32 %v415, -127.0
        %v420 = vmax.f32 %v416, -127.0
        %v421 = vmax.f32 %v417, -127.0
        %v422 = vmax.f32 %v418, -127.0
        %v423 = vmin.f32 %v419, 127.0
        %v424 = vmin.f32 %v420, 127.0
        %v425 = vmin.f32 %v421, 127.0
        %v426 = vmin.f32 %v422, 127.0
        %v427 = vmax.f32 %v423, -128.0
        %v428 = vmax.f32 %v424, -128.0
        %v429 = vmax.f32 %v425, -128.0
        %v430 = vmax.f32 %v426, -128.0
        %v431 = vmin.f32 %v427, 127.0
        %v432 = vmin.f32 %v428, 127.0
        %v433 = vmin.f32 %v429, 127.0
        %v434 = vmin.f32 %v430, 127.0
        %v435 = vcvt.f32.s32.to.zero.pseudo %v431
        %v436 = vcvt.f32.s32.to.zero.pseudo %v432
        %v437 = vcvt.f32.s32.to.zero.pseudo %v433
        %v438 = vcvt.f32.s32.to.zero.pseudo %v434
        %v439 = vpack.c.b16 %v436, %v435
        %v440 = vpack.c.b16 %v438, %v437
        %v441 = vpack.c.b8 %v440, %v439
        %442 = vst [vmem:[%s204] sm:$0xff] %v441
        %s443 = sand.u32 %s77, 1
        %s444 = scalar_lea.sflag [#allocation4], %s443
        %s445 = sand.u32 %s77, 1
        %s446 = smul.addr %s445, 8
        %s447 = scalar_lea.vmem [#allocation7], %s446
        %s448 = smul.u32 4, %s22
        %p449 = scmp.lt.s32.totalorder %s448, 7
        %s450 = scalar_select %p449, %s448, 7
        %s451 = smul.addr %s450, 8
        %s452 = scalar_lea.vmem %s3, %s451
        // Predicated region
        $region37: #{tpu_custom_call.1} parent=27 // pred_check
          %p453 = pneg %p87
        $region38: #{tpu_custom_call.1} parent=27 // pred_check_branch
          %455 = sbr.rel (%p453) target = $region40
        $region39: #{tpu_custom_call.1} parent=27 // pred_region
          %s457 = ssub.s32 128, 128
          %458 = vsyncadd %s444, %s457
          %s459 = smul.addr %s22, 128
          %s460 = scalar_lea.hbm %s2, %s459
          %s462 = sshll.u32 %s447, 4
          %s463 = int_to_ptr.vmem [resolvable:$true] %s462
          %465 = dma.vmem_to_hbm [thread:$0]  %s463, 128, %s460, %s444
        $region40: #{tpu_custom_call.1} parent=27 // pred_fallthru
          _
        // Predicated region
        $region41: #{tpu_custom_call.1} parent=27 // pred_check
          %p466 = pneg %p113
        $region42: #{tpu_custom_call.1} parent=27 // pred_check_branch
          %468 = sbr.rel (%p466) target = $region44
        $region43: #{tpu_custom_call.1} parent=27 // pred_region
          %s469 = smul.u32 4, %s22
        $region44: #{tpu_custom_call.1} parent=27 // pred_fallthru
          _
      $region28: #{tpu_custom_call.1} parent=5 // pred_fallthru
        _
      %p470 = scmp.le.s32.totalorder 2, %s17
      // Predicated region
      $region45: #{tpu_custom_call.1} parent=5 // pred_check
        %p471 = pneg %p470
      $region46: #{tpu_custom_call.1} parent=5 // pred_check_branch
        %473 = sbr.rel (%p471) target = $region48
      $region47: #{tpu_custom_call.1} parent=5 // pred_region
        %s474 = ssub.s32 %s17, 2
        // Predicated region
        $region49: #{tpu_custom_call.1} parent=47 // pred_check
          %p475 = pneg %p93
        $region50: #{tpu_custom_call.1} parent=47 // pred_check_branch
          %477 = sbr.rel (%p475) target = $region52
        $region51: #{tpu_custom_call.1} parent=47 // pred_region
          %s478 = sand.u32 %s78, 1
          %s479 = scalar_lea.sflag [#allocation4], %s478
          %s480 = sand.u32 %s78, 1
          %s481 = smul.addr %s480, 8
          %s482 = scalar_lea.vmem [#allocation7], %s481
          %483 = dma.done %s479, 128
        $region52: #{tpu_custom_call.1} parent=47 // pred_fallthru
          _
        // Predicated region
        $region53: #{tpu_custom_call.1} parent=47 // pred_check
          %p484 = pneg %p119
        $region54: #{tpu_custom_call.1} parent=47 // pred_check_branch
          %486 = sbr.rel (%p484) target = $region56
        $region55: #{tpu_custom_call.1} parent=47 // pred_region
          %s487 = smul.u32 4, %s23
          %p488 = scmp.lt.s32.totalorder %s487, 7
          %s489 = scalar_select %p488, %s487, 7
          %s490 = smul.addr %s489, 8
          %s491 = scalar_lea.vmem %s3, %s490
        $region56: #{tpu_custom_call.1} parent=47 // pred_fallthru
          _
      $region48: #{tpu_custom_call.1} parent=5 // pred_fallthru
        _
    $region6: #{tpu_custom_call.1} parent=1 // loop_footer
      %s21 = sadd.s32 1, %s17
    $region7: #{tpu_custom_call.1} parent=1 // loop_footer_branch
      %16 = sbr.rel target = $region3
    $region8: #{tpu_custom_call.1} parent=1 // loop_exit
      _
    %492 = vsyncpa [#allocation3], 1
    %s493 = scalar_lea.sflag [#allocation3], 1
    %494 = vsyncpa %s493, 1
    %495 = vsyncpa [#allocation6], 1
    %496 = vsyncpa [#allocation4], 1
    %s497 = scalar_lea.sflag [#allocation4], 1
    %498 = vsyncpa %s497, 1

</llo_original>
